<compile_context>
chip_gen: v7x
topology: tpu7x:2x2x1
jax: 0.10.0
libtpu: 0.0.40
codegen_flags: <defaults>
</compile_context>

<pallas_src>
import jax
import jax.numpy as jnp
from jax.experimental import pallas as pl
from jax.experimental.pallas import tpu as pltpu


def _locked_dropout_kernel(x_ref, m_ref, o_ref):
    # x_ref: (tt, tn) streamed tile; m_ref: (1, tn) pre-scaled locked mask row.
    o_ref[...] = x_ref[...] * m_ref[...]


def _round_up(v, m):
    return ((v + m - 1) // m) * m


def _vmem_capacity_bytes():
    """Per-TensorCore VMEM capacity; conservative (v7x = 64 MiB) on failure."""
    try:
        return int(pltpu.get_tpu_info().vmem_capacity_bytes)
    except Exception:
        return 64 << 20


def _pick_tiles(T, Npad, itemsize, block_bytes, pipeline_budget):
    """Choose (tt, tn): 4 x/out pipeline buffers + 2 mask rows must fit budget."""
    sublane = max(8, 32 // itemsize)            # 8 f32, 16 bf16, 32 int8/fp8
    mask_bytes = Npad * itemsize
    per_buf = (pipeline_budget - 2 * mask_bytes - (2 << 20)) // 4
    per_buf = max(per_buf, sublane * 128 * itemsize)   # never below one tile
    per_buf = min(per_buf, block_bytes)

    # Lane tiling only when a minimal (sublane, Npad) block already blows the
    # per-buffer budget (very wide B*H); keeps tn a multiple of 128.
    tn = Npad
    if sublane * tn * itemsize > per_buf:
        tn = max(128, (per_buf // (sublane * itemsize) // 128) * 128)

    # Time tiling: largest sublane-aligned tt under the per-buffer budget.
    tt = max(sublane, per_buf // (tn * itemsize))
    if tt < T:
        tt = max(sublane, (tt // sublane) * sublane)
    # Megacore (v7x): guarantee >= 2 time tiles whenever T allows it.
    if tt >= T and T >= 2 * sublane:
        tt = _round_up(pl.cdiv(T, 2), sublane)
    tt = min(tt, T)
    return tt, tn


def locked_dropout(x, key, dropout: float = 0.5, training: bool = True, *,
                   block_bytes: int | None = None, donate_x: bool = False):
    """Pallas implementation of LockedDropout.forward.

    x: (T, B, H).  Returns x unchanged when not training or dropout <= 0,
    otherwise x * mask with mask ~ Bernoulli(1 - dropout) / (1 - dropout),
    shared ("locked") across the time axis, matching the PyTorch module.
    """
    if (not training) or dropout <= 0:
        return x

    T, B, H = x.shape
    keep = 1.0 - float(dropout)
    N = B * H

    # Locked mask: one Bernoulli(1-p)/(1-p) row, pre-scaled and pre-cast so the
    # kernel multiplies in x's native dtype (bf16 stays bf16).
    bern = jax.random.bernoulli(key, p=keep, shape=(1, N))
    mask = jnp.where(bern,
                     jnp.asarray(1.0 / keep, dtype=x.dtype),
                     jnp.asarray(0.0, dtype=x.dtype))

    # Lane-dense layout.  Pad B*H to a 128 multiple so stores are full-lane
    # vst's; real LSTM hidden sizes are 128-aligned so the pad is usually a
    # no-op (the padded path costs one extra copy in the wrapper).
    x2 = x.reshape(T, N)
    Npad = _round_up(N, 128)
    if Npad != N:
        x2 = jnp.pad(x2, ((0, 0), (0, Npad - N)))
        mask = jnp.pad(mask, ((0, 0), (0, Npad - N)))

    itemsize = x2.dtype.itemsize
    vmem_cap = _vmem_capacity_bytes()
    # v7x (64 MiB/TC) -> 48 MiB pipeline budget; v5e/v6e (128 MiB) -> 96 MiB.
    pipeline_budget = min((vmem_cap * 3) // 4, 96 << 20)
    if block_bytes is None:
        block_bytes = (8 << 20) if vmem_cap <= (64 << 20) else (16 << 20)

    tt, tn = _pick_tiles(T, Npad, itemsize, block_bytes, pipeline_budget)
    grid = (pl.cdiv(T, tt), pl.cdiv(Npad, tn))

    # Explicit scoped-VMEM limit: 2 in + 2 out buffers, 2 mask rows, headroom.
    vmem_limit = min(vmem_cap,
                     max(32 << 20,
                         4 * tt * tn * itemsize + 2 * tn * itemsize + (4 << 20)))

    out2 = pl.pallas_call(
        _locked_dropout_kernel,
        out_shape=jax.ShapeDtypeStruct((T, Npad), x.dtype),
        grid=grid,
        in_specs=[
            pl.BlockSpec((tt, tn), lambda t, j: (t, j)),   # streamed x tiles
            pl.BlockSpec((1, tn), lambda t, j: (0, j)),    # resident locked mask
        ],
        out_specs=pl.BlockSpec((tt, tn), lambda t, j: (t, j)),
        compiler_params=pltpu.CompilerParams(
            dimension_semantics=("parallel", "parallel"),  # independent tiles
            vmem_limit_bytes=int(vmem_limit),
        ),
        input_output_aliases=({0: 0} if donate_x else {}),
    )(x2, mask)

    if Npad != N:
        out2 = out2[:, :N]
    return out2.reshape(T, B, H)


def _check(x, out, dropout):
    keep = 1.0 - dropout
    ratio = out / jnp.where(x == 0, 1.0, x)          # recovered per-element mask
    is_zero = jnp.isclose(ratio, 0.0, atol=1e-2)
    is_scaled = jnp.isclose(ratio, 1.0 / keep, atol=1e-2)
    assert bool(jnp.all(is_zero | is_scaled)), "mask values not in {0, 1/keep}"
    # mask must be identical ("locked") across the time axis
    assert bool(jnp.all(jnp.isclose(ratio, ratio[0:1], atol=1e-2))), \
        "mask not locked across time"


if __name__ == "__main__":
    key_x, key_mask, key_x2, key_mask2 = jax.random.split(jax.random.PRNGKey(0), 4)
    dropout = 0.5

    # Small f32 case (exercises the N -> 128 lane-padding path).
    T, B, H = 8, 2, 32
    x = jax.random.normal(key_x, (T, B, H), dtype=jnp.float32)
    out = jax.block_until_ready(
        locked_dropout(x, key_mask, dropout=dropout, training=True))
    _check(x, out, dropout)

    # bf16 case with a multi-tile time grid (exercises dtype-aware sublane
    # rounding and the >=2-time-tiles megacore rule).
    T2, B2, H2 = 64, 2, 128
    xb = jax.random.normal(key_x2, (T2, B2, H2), dtype=jnp.bfloat16)
    outb = jax.block_until_ready(
        locked_dropout(xb, key_mask2, dropout=dropout, training=True))
    _check(xb.astype(jnp.float32), outb.astype(jnp.float32), dropout)

    # eval mode / zero dropout must be identity
    out_eval = jax.block_until_ready(
        locked_dropout(x, key_mask, dropout=dropout, training=False))
    assert bool(jnp.all(out_eval == x))

    print("KERNEL_OK")
</pallas_src>

<mosaic_0001>
module attributes {stable_mosaic.version = 11 : i64} {
  func.func @_locked_dropout_kernel(%arg0: i32, %arg1: i32, %arg2: memref<8x128xf32, #tpu.memory_space<vmem>>, %arg3: memref<1x128xf32, #tpu.memory_space<vmem>>, %arg4: memref<8x128xf32, #tpu.memory_space<vmem>>) attributes {dimension_semantics = [#tpu.dimension_semantics<parallel>, #tpu.dimension_semantics<parallel>], iteration_bounds = array<i64: 1, 1>, scalar_prefetch = 0 : i64, scratch_operands = 0 : i64, tpu.core_type = #tpu.core_type<tc>, window_params = [{transform_indices = @transform_0, window_bounds = array<i64: 8, 128>}, {transform_indices = @transform_1, window_bounds = array<i64: 1, 128>}, {transform_indices = @transform_2, window_bounds = array<i64: 8, 128>}]} {
    %c0 = arith.constant 0 : index
    %c0_0 = arith.constant 0 : index
    %0 = vector.load %arg2[%c0, %c0_0] : memref<8x128xf32, #tpu.memory_space<vmem>>, vector<8x128xf32>
    %c0_1 = arith.constant 0 : index
    %c0_2 = arith.constant 0 : index
    %1 = vector.load %arg3[%c0_1, %c0_2] : memref<1x128xf32, #tpu.memory_space<vmem>>, vector<1x128xf32>
    %2 = vector.broadcast %1 : vector<1x128xf32> to vector<8x128xf32>
    %3 = arith.mulf %0, %2 : vector<8x128xf32>
    %c0_3 = arith.constant 0 : index
    %c0_4 = arith.constant 0 : index
    %4 = vector.load %arg4[%c0_3, %c0_4] : memref<8x128xf32, #tpu.memory_space<vmem>>, vector<8x128xf32>
    tpu.vector_store %arg4[%c0_3, %c0_4], %3 {strides = array<i32>} : memref<8x128xf32, #tpu.memory_space<vmem>>, vector<8x128xf32>,
    return
  }
  func.func @transform_0(%arg0: i32, %arg1: i32) -> (i32, i32) {
    %c0_i32 = arith.constant 0 : i32
    return %arg0, %arg1 : i32, i32
  }
  func.func @transform_1(%arg0: i32, %arg1: i32) -> (i32, i32) {
    %c0_i32 = arith.constant 0 : i32
    %c0_i32_0 = arith.constant 0 : i32
    return %c0_i32, %arg1 : i32, i32
  }
  func.func @transform_2(%arg0: i32, %arg1: i32) -> (i32, i32) {
    %c0_i32 = arith.constant 0 : i32
    return %arg0, %arg1 : i32, i32
  }
}

</mosaic_0001>

<llo_original>
// kernel: tpu_custom_call.1
$region0: #{tpu_custom_call.1}
  #allocation0 [shape = 'u32[]', space=smem, size = 0x4, offset = 0x4, fixed_abs, tag = 'smem constant byte address 0x4 - core index']
  #allocation1 [shape = 'u32[144,128]{1,0:T(1,128)}', space=vmem, size = 0x12000, scoped, tag = 'internal scratch']
  %s0 = inlined_call_operand.hbm [shape: f32[8,128], index: 0, kind: input, shape index: {}]
  %s1 = inlined_call_operand.vmem [shape: f32[1,128], index: 1, kind: input, shape index: {}]
  %s2 = inlined_call_operand.hbm [shape: f32[8,128], index: 2, kind: output, shape index: {}]
  %s3 = sld [smem:[#allocation0]]
  $region22: #{tpu_custom_call.1} parent=0
    _
  %s5 = ssub.s32 1, %s3
  %s6 = scalar_select 0, %s5, %s3
  $region1: #{tpu_custom_call.1} parent=0
    #allocation2 [shape = 'u8[4096]{0}', space=vmem, size = 0x1000, scoped, tag = 'input window, operand 0, single buffered']
    #allocation3 [shape = 's32[1]{0}', space=sflag, size = 0x4, scoped, tag = 'scoped memory for tpu_custom_call.1']
    #allocation4 [shape = 's32[1]{0}', space=sflag, size = 0x4, scoped, tag = 'scoped memory for tpu_custom_call.1']
    #allocation5 [shape = 'u8[4096]{0}', space=vmem, size = 0x1000, scoped, tag = 'output window, operand 0, single buffered']
    %7 = vsyncpa [#allocation3], 0
    %8 = vsyncpa [#allocation4], 0
    // Predicated region
    $region2: #{tpu_custom_call.1} parent=1 // pred_check
      _
    $region3: #{tpu_custom_call.1} parent=1 // pred_check_branch
      %10 = sbr.rel (0) target = $region5
    $region4: #{tpu_custom_call.1} parent=1 // pred_region
      %s12 = ssub.s32 128, 128
      %13 = vsyncadd [#allocation3], %s12
      %s15 = sshll.u32 [#allocation2], 4
      %s16 = int_to_ptr.vmem [resolvable:$true] %s15
      %18 = dma.hbm_to_vmem [thread:$0]  %s0, 128, %s16, [#allocation3]
    $region5: #{tpu_custom_call.1} parent=1 // pred_fallthru
      _
    // Predicated region
    $region6: #{tpu_custom_call.1} parent=1 // pred_check
      _
    $region7: #{tpu_custom_call.1} parent=1 // pred_check_branch
      %20 = sbr.rel (0) target = $region9
    $region8: #{tpu_custom_call.1} parent=1 // pred_region
      _
    $region9: #{tpu_custom_call.1} parent=1 // pred_fallthru
      _
    // Predicated region
    $region10: #{tpu_custom_call.1} parent=1 // pred_check
      _
    $region11: #{tpu_custom_call.1} parent=1 // pred_check_branch
      %22 = sbr.rel (0) target = $region13
    $region12: #{tpu_custom_call.1} parent=1 // pred_region
      %23 = dma.done [#allocation3], 128
    $region13: #{tpu_custom_call.1} parent=1 // pred_fallthru
      _
    %v24 = vld [vmem:[#allocation2] sm:$0xff]
    %v25 = vld [vmem:[%s1] sm:$0x1]
    %v27 = vlaneseq
    %v28 = vshrl.u32 %v27, 7
    %v29 = vsub.s32 0, %v28
    %v30 = vrot.slane %v25, %v29
    %v32 = vmul.f32 %v24, %v30
    %33 = vst [vmem:[#allocation5] sm:$0xff] %v32
    // Predicated region
    $region14: #{tpu_custom_call.1} parent=1 // pred_check
      _
    $region15: #{tpu_custom_call.1} parent=1 // pred_check_branch
      %35 = sbr.rel (0) target = $region17
    $region16: #{tpu_custom_call.1} parent=1 // pred_region
      %s37 = ssub.s32 128, 128
      %38 = vsyncadd [#allocation4], %s37
      %s40 = sshll.u32 [#allocation5], 4
      %s41 = int_to_ptr.vmem [resolvable:$true] %s40
      %43 = dma.vmem_to_hbm [thread:$0]  %s41, 128, %s2, [#allocation4]
    $region17: #{tpu_custom_call.1} parent=1 // pred_fallthru
      _
    // Predicated region
    $region18: #{tpu_custom_call.1} parent=1 // pred_check
      _
    $region19: #{tpu_custom_call.1} parent=1 // pred_check_branch
      %45 = sbr.rel (0) target = $region21
    $region20: #{tpu_custom_call.1} parent=1 // pred_region
      %46 = dma.done [#allocation4], 128
    $region21: #{tpu_custom_call.1} parent=1 // pred_fallthru
      _
    %47 = vsyncpa [#allocation3], 1
    %48 = vsyncpa [#allocation4], 1

</llo_original>
